<compile_context>
chip_gen: v6e
topology: v6e:2x2x1
jax: 0.10.0
libtpu: 0.0.40
codegen_flags: <defaults>
</compile_context>

<pallas_src>
import numpy as np
import jax
import jax.numpy as jnp
from jax import lax
from jax.experimental import pallas as pl
from jax.experimental.pallas import tpu as pltpu

# ----------------------- model configuration --------------------------------
NUM_CHANNELS = 4            # config['num_channels']
CONV_LAYERS = (8, 8)        # config['encoder_conv_layers']
KERNEL_SIZE = 3             # config['encoder_conv_kernel_size']
FC_LAYERS = (32,)           # config['encoder_fc_layers']
LATENT_DIM = 16             # config['latent_dim']
INITIAL_TEMPERATURE = 10.0  # self.temperature (nn.Parameter, used in forward)
GUMBEL_EPS = 1e-20

BATCH = 2
H_IN = W_IN = 8
H1 = H_IN - KERNEL_SIZE + 1          # 6  (after conv1, VALID)
H2 = H1 - KERNEL_SIZE + 1            # 4  (after conv2, VALID)
FLAT_DIM = H2 * H2 * CONV_LAYERS[1]  # 128

IN_FLAT = NUM_CHANNELS * H_IN * W_IN      # 256  (NCHW flatten of the input)
C1_FLAT = H1 * H1 * CONV_LAYERS[0]        # 288  (HWC flatten of conv1 output)
C2_FLAT = H2 * H2 * CONV_LAYERS[1]        # 128  (HWC flatten of conv2 output)


def _round_up(x, m):
    return ((x + m - 1) // m) * m


# -------------------- single fused forward kernel ---------------------------
def fused_forward_kernel(temp_ref, x_ref, w1d_ref, w2d_ref, wfc_ref, wlat_ref,
                         b_ref, g_ref, out_ref):
    """Whole forward pass for one batch tile; 4 lane-dense bf16 MXU matmuls.

    temp_ref: (1, 1)     f32 SMEM   runtime temperature
    x_ref:    (TM, 256)  bf16       NCHW-flattened input tile
    w1d_ref:  (256, 288) bf16       conv1 as dense (Toeplitz) matmul
    w2d_ref:  (288, 128) bf16       conv2 as dense matmul (K=288 -> 3 MXU
                                    passes on v5e's 128-wide MXU; minor,
                                    latency-bound at this M)
    wfc_ref:  (128, 32)  bf16
    wlat_ref: (32, 16)   bf16
    b_ref:    (4, 288)   f32        row0=b1 tiled, row1=b2 tiled, row2=b_fc,
                                    row3=b_lat (zero padded on the right)
    g_ref:    (TM, 16)   f32        pre-sampled Gumbel(0,1) noise
    out_ref:  (TM, 32)   f32        [:, :16]=reparam, [:, 16:]=logits
    """
    # conv1 + bias + ReLU  (one MXU push, K=256)
    h1 = jnp.dot(x_ref[...], w1d_ref[...], preferred_element_type=jnp.float32)
    h1 = jnp.maximum(h1 + b_ref[0:1, 0:C1_FLAT], 0.0)

    # conv2 + bias + ReLU  (one MXU push, K=288)
    h2 = jnp.dot(h1.astype(jnp.bfloat16), w2d_ref[...],
                 preferred_element_type=jnp.float32)
    h2 = jnp.maximum(h2 + b_ref[1:2, 0:C2_FLAT], 0.0)

    # Flatten is implicit: h2 columns are already in (H, W, C) order.

    # FC + bias + ReLU
    hid = jnp.dot(h2.astype(jnp.bfloat16), wfc_ref[...],
                  preferred_element_type=jnp.float32)
    hid = jnp.maximum(hid + b_ref[2:3, 0:FC_LAYERS[0]], 0.0)

    # latent layer -> logits
    logits = jnp.dot(hid.astype(jnp.bfloat16), wlat_ref[...],
                     preferred_element_type=jnp.float32)
    logits = logits + b_ref[3:4, 0:LATENT_DIM]

    # reparameterize_gumbel_softmax: softmax((logits + gumbel) / T, dim=-1)
    y = (logits + g_ref[...]) / temp_ref[0, 0]
    m = jnp.max(y, axis=-1, keepdims=True)
    e = jnp.exp(y - m)
    s = jnp.sum(e, axis=-1, keepdims=True)
    reparam = e * pl.reciprocal(s, approx=True)   # cheap EUP vrcp path

    out_ref[...] = jnp.concatenate([reparam, logits], axis=-1)


# ----------------------------- wrapper ---------------------------------------
def cond_cat_vae_forward(x_nchw, prepared, gumbel_noise, temperature):
    """Full forward: returns (reparam_latent, logits), each (B, LATENT_DIM)."""
    b = x_nchw.shape[0]
    # Contiguous NCHW flatten (conv1 Toeplitz is indexed in this order, so no
    # NCHW->NHWC transpose is ever materialized); stream the input in bf16.
    x_flat = x_nchw.reshape(b, IN_FLAT).astype(jnp.bfloat16)
    g = gumbel_noise.astype(jnp.float32)

    # Batch tiling: weights stay VMEM-resident across grid steps (constant
    # index_map), batch tiles are double-buffered by BlockSpec.
    tm = min(256, _round_up(b, 8))
    b_pad = _round_up(b, tm)
    if b_pad != b:
        x_flat = jnp.pad(x_flat, ((0, b_pad - b), (0, 0)))
        g = jnp.pad(g, ((0, b_pad - b), (0, 0)))
    grid = (b_pad // tm,)

    temp = jnp.asarray(temperature, jnp.float32).reshape(1, 1)

    out = pl.pallas_call(
        fused_forward_kernel,
        out_shape=jax.ShapeDtypeStruct((b_pad, 2 * LATENT_DIM), jnp.float32),
        grid_spec=pltpu.PrefetchScalarGridSpec(
            num_scalar_prefetch=0,
            grid=grid,
            in_specs=[
                pl.BlockSpec(memory_space=pltpu.MemorySpace.SMEM),        # temperature
                pl.BlockSpec((tm, IN_FLAT), lambda i: (i, 0)),            # x tile
                pl.BlockSpec((IN_FLAT, C1_FLAT), lambda i: (0, 0)),       # w1_dense
                pl.BlockSpec((C1_FLAT, C2_FLAT), lambda i: (0, 0)),       # w2_dense
                pl.BlockSpec((C2_FLAT, FC_LAYERS[0]), lambda i: (0, 0)),  # w_fc
                pl.BlockSpec((FC_LAYERS[0], LATENT_DIM), lambda i: (0, 0)),  # w_lat
                pl.BlockSpec((4, C1_FLAT), lambda i: (0, 0)),             # packed biases
                pl.BlockSpec((tm, LATENT_DIM), lambda i: (i, 0)),         # gumbel tile
            ],
            out_specs=pl.BlockSpec((tm, 2 * LATENT_DIM), lambda i: (i, 0)),
        ),
        compiler_params=pltpu.CompilerParams(
            # Only shard across TensorCores when there is real work per core.
            dimension_semantics=(("parallel",) if grid[0] > 1 else ("arbitrary",))),
    )(temp, x_flat,
      prepared["w1_dense"], prepared["w2_dense"],
      prepared["w_fc"], prepared["w_lat"],
      prepared["b_all"], g)

    reparam = out[:b, :LATENT_DIM]
    logits = out[:b, LATENT_DIM:]
    return reparam, logits


# ----------------- host-side (one-time) weight preparation --------------------
def _conv_as_matmul_weights(w_hwio, h_in, w_in, input_order):
    """Exact lowering of a VALID conv to a dense (in_flat, out_flat) matrix.

    input_order: 'CHW' (NCHW flatten of the conv input) or 'HWC'.
    Output columns are always in (H_out, W_out, C_out) flatten order.
    """
    w = np.asarray(w_hwio, np.float32)
    kh_, kw_, c_in, c_out = w.shape
    h_out, w_out = h_in - kh_ + 1, w_in - kw_ + 1
    dense = np.zeros((h_in * w_in * c_in, h_out * w_out * c_out), np.float32)
    for oh in range(h_out):
        for ow in range(w_out):
            out_base = (oh * w_out + ow) * c_out
            for kh in range(kh_):
                for kw in range(kw_):
                    ih, iw = oh + kh, ow + kw
                    for c in range(c_in):
                        if input_order == "CHW":
                            in_idx = (c * h_in + ih) * w_in + iw
                        else:  # 'HWC'
                            in_idx = (ih * w_in + iw) * c_in + c
                        dense[in_idx, out_base:out_base + c_out] = w[kh, kw, c]
    return dense


def prepare_params(params):
    """Build the dense conv matrices / packed bias buffer once (outside jit).

    Weights are stored in bfloat16 (the Toeplitz entries are exact copies of
    the conv weights, so bf16 storage == bf16 conv weights); biases stay f32
    and are added after f32 MXU accumulation.
    """
    w1_dense = _conv_as_matmul_weights(params["w1"], H_IN, W_IN, "CHW")  # (256, 288)
    w2_dense = _conv_as_matmul_weights(params["w2"], H1, H1, "HWC")      # (288, 128)

    b_all = np.zeros((4, C1_FLAT), np.float32)
    b_all[0, :C1_FLAT] = np.tile(np.asarray(params["b1"], np.float32), H1 * H1)
    b_all[1, :C2_FLAT] = np.tile(np.asarray(params["b2"], np.float32), H2 * H2)
    b_all[2, :FC_LAYERS[0]] = np.asarray(params["b_fc"], np.float32)
    b_all[3, :LATENT_DIM] = np.asarray(params["b_lat"], np.float32)

    return {
        "w1_dense": jnp.asarray(w1_dense, jnp.bfloat16),
        "w2_dense": jnp.asarray(w2_dense, jnp.bfloat16),
        "w_fc": jnp.asarray(params["w_fc"], jnp.bfloat16),
        "w_lat": jnp.asarray(params["w_lat"], jnp.bfloat16),
        "b_all": jnp.asarray(b_all),
    }


# --------------------------- pure-JAX reference ------------------------------
def reference_forward(x_nchw, params, gumbel_noise, temperature=INITIAL_TEMPERATURE):
    x = jnp.transpose(x_nchw, (0, 2, 3, 1)).astype(jnp.float32)
    y = lax.conv_general_dilated(x, params["w1"], (1, 1), "VALID",
                                 dimension_numbers=("NHWC", "HWIO", "NHWC"))
    y = jax.nn.relu(y + params["b1"])
    y = lax.conv_general_dilated(y, params["w2"], (1, 1), "VALID",
                                 dimension_numbers=("NHWC", "HWIO", "NHWC"))
    y = jax.nn.relu(y + params["b2"])
    y = y.reshape(y.shape[0], -1)
    y = jax.nn.relu(y @ params["w_fc"] + params["b_fc"])
    logits = y @ params["w_lat"] + params["b_lat"]
    reparam = jax.nn.softmax((logits + gumbel_noise) / temperature, axis=-1)
    return reparam, logits


# ------------------------------ init -----------------------------------------
def init_params(key):
    ks = jax.random.split(key, 8)

    def dense(k, shape):
        fan_in = shape[-2] if len(shape) == 2 else shape[0] * shape[1] * shape[2]
        return (jax.random.normal(k, shape, jnp.float32) / np.sqrt(fan_in)).astype(jnp.float32)

    # NOTE: w_fc rows are in (H, W, C) flatten order (matches the kernel and
    # the NHWC reference).  Loading a real PyTorch checkpoint would require a
    # row permutation from its (C, H, W) flatten order.
    return {
        "w1": dense(ks[0], (KERNEL_SIZE, KERNEL_SIZE, NUM_CHANNELS, CONV_LAYERS[0])),
        "b1": 0.01 * jax.random.normal(ks[1], (CONV_LAYERS[0],), jnp.float32),
        "w2": dense(ks[2], (KERNEL_SIZE, KERNEL_SIZE, CONV_LAYERS[0], CONV_LAYERS[1])),
        "b2": 0.01 * jax.random.normal(ks[3], (CONV_LAYERS[1],), jnp.float32),
        "w_fc": dense(ks[4], (FLAT_DIM, FC_LAYERS[0])),
        "b_fc": 0.01 * jax.random.normal(ks[5], (FC_LAYERS[0],), jnp.float32),
        "w_lat": dense(ks[6], (FC_LAYERS[0], LATENT_DIM)),
        "b_lat": 0.01 * jax.random.normal(ks[7], (LATENT_DIM,), jnp.float32),
    }


if __name__ == "__main__":
    key = jax.random.PRNGKey(0)
    k_x, k_p, k_u = jax.random.split(key, 3)

    # Input as the PyTorch module would see it: NCHW.
    x_nchw = jax.random.normal(k_x, (BATCH, NUM_CHANNELS, H_IN, W_IN), jnp.float32)
    params = init_params(k_p)
    prepared = prepare_params(params)   # one-time host-side lowering of convs

    # Gumbel(0,1) noise (torch.rand -> -log(-log(U+eps)+eps)); generated
    # deterministically outside the kernel so the kernel is reproducible and
    # comparable to the reference.
    u = jax.random.uniform(k_u, (BATCH, LATENT_DIM), jnp.float32)
    gumbel_noise = -jnp.log(-jnp.log(u + GUMBEL_EPS) + GUMBEL_EPS)

    temperature = jnp.float32(INITIAL_TEMPERATURE)   # runtime scalar, not baked in

    fwd = jax.jit(cond_cat_vae_forward)
    reparam, logits = fwd(x_nchw, prepared, gumbel_noise, temperature)
    jax.block_until_ready((reparam, logits))

    ref_reparam, ref_logits = reference_forward(x_nchw, params, gumbel_noise)
    # bf16 weight/activation storage -> looser tolerances vs the f32 reference.
    np.testing.assert_allclose(np.asarray(logits), np.asarray(ref_logits),
                               rtol=5e-2, atol=3e-2)
    np.testing.assert_allclose(np.asarray(reparam), np.asarray(ref_reparam),
                               rtol=5e-2, atol=2e-3)

    # TODO(synk): the model's Decoder (einsum 'boc,bc->bo' with condition
    # encoding) is never invoked in CondCatVAEModelTorch.forward, so it is
    # intentionally not part of the kernel forward pass.
    print("KERNEL_OK")
</pallas_src>

<mosaic_0001>
module attributes {stable_mosaic.version = 11 : i64} {
  func.func @fused_forward_kernel(%arg0: i32, %arg1: memref<1x1xf32, #tpu.memory_space<smem>>, %arg2: memref<8x256xbf16, #tpu.memory_space<vmem>>, %arg3: memref<256x288xbf16, #tpu.memory_space<vmem>>, %arg4: memref<288x128xbf16, #tpu.memory_space<vmem>>, %arg5: memref<128x32xbf16, #tpu.memory_space<vmem>>, %arg6: memref<32x16xbf16, #tpu.memory_space<vmem>>, %arg7: memref<4x288xf32, #tpu.memory_space<vmem>>, %arg8: memref<8x16xf32, #tpu.memory_space<vmem>>, %arg9: memref<8x32xf32, #tpu.memory_space<vmem>>) attributes {dimension_semantics = [#tpu.dimension_semantics<arbitrary>], iteration_bounds = array<i64: 1>, scalar_prefetch = 0 : i64, scratch_operands = 0 : i64, tpu.core_type = #tpu.core_type<tc>, window_params = [{transform_indices = @transform_0, window_bounds = array<i64: 1, 1>}, {transform_indices = @transform_1, window_bounds = array<i64: 8, 256>}, {pipeline_mode = #tpu.pipeline_mode<synchronous>, transform_indices = @transform_2, window_bounds = array<i64: 256, 288>}, {pipeline_mode = #tpu.pipeline_mode<synchronous>, transform_indices = @transform_3, window_bounds = array<i64: 288, 128>}, {pipeline_mode = #tpu.pipeline_mode<synchronous>, transform_indices = @transform_4, window_bounds = array<i64: 128, 32>}, {pipeline_mode = #tpu.pipeline_mode<synchronous>, transform_indices = @transform_5, window_bounds = array<i64: 32, 16>}, {pipeline_mode = #tpu.pipeline_mode<synchronous>, transform_indices = @transform_6, window_bounds = array<i64: 4, 288>}, {transform_indices = @transform_7, window_bounds = array<i64: 8, 16>}, {transform_indices = @transform_8, window_bounds = array<i64: 8, 32>}]} {
    %c0 = arith.constant 0 : index
    %c0_0 = arith.constant 0 : index
    %0 = vector.load %arg2[%c0, %c0_0] : memref<8x256xbf16, #tpu.memory_space<vmem>>, vector<8x256xbf16>
    %c0_1 = arith.constant 0 : index
    %c0_2 = arith.constant 0 : index
    %1 = vector.load %arg3[%c0_1, %c0_2] : memref<256x288xbf16, #tpu.memory_space<vmem>>, vector<256x288xbf16>
    %cst = arith.constant dense<0.000000e+00> : vector<8x288xf32>
    %2 = tpu.matmul %0, %1, %cst {dimension_numbers = #tpu.dot_dimension_numbers<[1], [0], [0], [1], [0, 0, 1, 1], [], []>} : vector<8x256xbf16>, vector<256x288xbf16>, vector<8x288xf32> -> vector<8x288xf32>
    %c0_3 = arith.constant 0 : index
    %c0_4 = arith.constant 0 : index
    %3 = vector.load %arg7[%c0_3, %c0_4] : memref<4x288xf32, #tpu.memory_space<vmem>>, vector<1x288xf32>
    %4 = vector.broadcast %3 : vector<1x288xf32> to vector<8x288xf32>
    %5 = arith.addf %2, %4 : vector<8x288xf32>
    %cst_5 = arith.constant 0.000000e+00 : f32
    %6 = vector.broadcast %cst_5 : f32 to vector<8x288xf32>
    %7 = arith.maximumf %5, %6 : vector<8x288xf32>
    %8 = arith.truncf %7 : vector<8x288xf32> to vector<8x288xbf16>
    %c0_6 = arith.constant 0 : index
    %c0_7 = arith.constant 0 : index
    %9 = vector.load %arg4[%c0_6, %c0_7] : memref<288x128xbf16, #tpu.memory_space<vmem>>, vector<288x128xbf16>
    %cst_8 = arith.constant dense<0.000000e+00> : vector<8x128xf32>
    %10 = tpu.matmul %8, %9, %cst_8 {dimension_numbers = #tpu.dot_dimension_numbers<[1], [0], [0], [1], [0, 0, 1, 1], [], []>} : vector<8x288xbf16>, vector<288x128xbf16>, vector<8x128xf32> -> vector<8x128xf32>
    %c1 = arith.constant 1 : index
    %c0_9 = arith.constant 0 : index
    %11 = vector.load %arg7[%c1, %c0_9] : memref<4x288xf32, #tpu.memory_space<vmem>>, vector<1x128xf32>
    %12 = vector.broadcast %11 : vector<1x128xf32> to vector<8x128xf32>
    %13 = arith.addf %10, %12 : vector<8x128xf32>
    %cst_10 = arith.constant 0.000000e+00 : f32
    %14 = vector.broadcast %cst_10 : f32 to vector<8x128xf32>
    %15 = arith.maximumf %13, %14 : vector<8x128xf32>
    %16 = arith.truncf %15 : vector<8x128xf32> to vector<8x128xbf16>
    %c0_11 = arith.constant 0 : index
    %c0_12 = arith.constant 0 : index
    %17 = vector.load %arg5[%c0_11, %c0_12] : memref<128x32xbf16, #tpu.memory_space<vmem>>, vector<128x32xbf16>
    %cst_13 = arith.constant dense<0.000000e+00> : vector<8x32xf32>
    %18 = tpu.matmul %16, %17, %cst_13 {dimension_numbers = #tpu.dot_dimension_numbers<[1], [0], [0], [1], [0, 0, 1, 1], [], []>} : vector<8x128xbf16>, vector<128x32xbf16>, vector<8x32xf32> -> vector<8x32xf32>
    %c2 = arith.constant 2 : index
    %c0_14 = arith.constant 0 : index
    %19 = vector.load %arg7[%c2, %c0_14] : memref<4x288xf32, #tpu.memory_space<vmem>>, vector<1x32xf32>
    %20 = vector.broadcast %19 : vector<1x32xf32> to vector<8x32xf32>
    %21 = arith.addf %18, %20 : vector<8x32xf32>
    %cst_15 = arith.constant 0.000000e+00 : f32
    %22 = vector.broadcast %cst_15 : f32 to vector<8x32xf32>
    %23 = arith.maximumf %21, %22 : vector<8x32xf32>
    %24 = arith.truncf %23 : vector<8x32xf32> to vector<8x32xbf16>
    %c0_16 = arith.constant 0 : index
    %c0_17 = arith.constant 0 : index
    %25 = vector.load %arg6[%c0_16, %c0_17] : memref<32x16xbf16, #tpu.memory_space<vmem>>, vector<32x16xbf16>
    %cst_18 = arith.constant dense<0.000000e+00> : vector<8x16xf32>
    %26 = tpu.matmul %24, %25, %cst_18 {dimension_numbers = #tpu.dot_dimension_numbers<[1], [0], [0], [1], [0, 0, 1, 1], [], []>} : vector<8x32xbf16>, vector<32x16xbf16>, vector<8x16xf32> -> vector<8x16xf32>
    %c3 = arith.constant 3 : index
    %c0_19 = arith.constant 0 : index
    %27 = vector.load %arg7[%c3, %c0_19] : memref<4x288xf32, #tpu.memory_space<vmem>>, vector<1x16xf32>
    %28 = vector.broadcast %27 : vector<1x16xf32> to vector<8x16xf32>
    %29 = arith.addf %26, %28 : vector<8x16xf32>
    %c0_20 = arith.constant 0 : index
    %c0_21 = arith.constant 0 : index
    %30 = vector.load %arg8[%c0_20, %c0_21] : memref<8x16xf32, #tpu.memory_space<vmem>>, vector<8x16xf32>
    %31 = arith.addf %29, %30 : vector<8x16xf32>
    %c0_22 = arith.constant 0 : index
    %c0_23 = arith.constant 0 : index
    %32 = memref.load %arg1[%c0_22, %c0_23] : memref<1x1xf32, #tpu.memory_space<smem>>
    %33 = vector.broadcast %32 : f32 to vector<8x16xf32>
    %34 = arith.divf %31, %33 : vector<8x16xf32>
    %cst_24 = arith.constant dense<0xFF800000> : vector<8xf32>
    %35 = vector.multi_reduction <maximumf>, %34, %cst_24 [1] : vector<8x16xf32> to vector<8xf32>
    %36 = vector.shape_cast %35 : vector<8xf32> to vector<8x1xf32>
    %37 = vector.broadcast %36 : vector<8x1xf32> to vector<8x16xf32>
    %38 = arith.subf %34, %37 : vector<8x16xf32>
    %39 = math.exp %38 : vector<8x16xf32>
    %cst_25 = arith.constant dense<0.000000e+00> : vector<8xf32>
    %40 = vector.multi_reduction <add>, %39, %cst_25 [1] : vector<8x16xf32> to vector<8xf32>
    %41 = vector.shape_cast %40 : vector<8xf32> to vector<8x1xf32>
    %42 = tpu.reciprocal %41 {approx = true} : vector<8x1xf32> -> vector<8x1xf32>
    %43 = vector.broadcast %42 : vector<8x1xf32> to vector<8x16xf32>
    %44 = arith.mulf %39, %43 : vector<8x16xf32>
    %45 = tpu.concatenate %44, %29 in 1 : vector<8x16xf32>, vector<8x16xf32> -> vector<8x32xf32>
    %c0_26 = arith.constant 0 : index
    %c0_27 = arith.constant 0 : index
    %46 = vector.load %arg9[%c0_26, %c0_27] : memref<8x32xf32, #tpu.memory_space<vmem>>, vector<8x32xf32>
    tpu.vector_store %arg9[%c0_26, %c0_27], %45 {strides = array<i32>} : memref<8x32xf32, #tpu.memory_space<vmem>>, vector<8x32xf32>,
    return
  }
  func.func @transform_0(%arg0: i32) -> (i32, i32) {
    %c0_i32 = arith.constant 0 : i32
    %c0_i32_0 = arith.constant 0 : i32
    %c0_i32_1 = arith.constant 0 : i32
    return %c0_i32, %c0_i32_0 : i32, i32
  }
  func.func @transform_1(%arg0: i32) -> (i32, i32) {
    %c0_i32 = arith.constant 0 : i32
    %c0_i32_0 = arith.constant 0 : i32
    return %arg0, %c0_i32 : i32, i32
  }
  func.func @transform_2(%arg0: i32) -> (i32, i32) {
    %c0_i32 = arith.constant 0 : i32
    %c0_i32_0 = arith.constant 0 : i32
    %c0_i32_1 = arith.constant 0 : i32
    return %c0_i32, %c0_i32_0 : i32, i32
  }
  func.func @transform_3(%arg0: i32) -> (i32, i32) {
    %c0_i32 = arith.constant 0 : i32
    %c0_i32_0 = arith.constant 0 : i32
    %c0_i32_1 = arith.constant 0 : i32
    return %c0_i32, %c0_i32_0 : i32, i32
  }
  func.func @transform_4(%arg0: i32) -> (i32, i32) {
    %c0_i32 = arith.constant 0 : i32
    %c0_i32_0 = arith.constant 0 : i32
    %c0_i32_1 = arith.constant 0 : i32
    return %c0_i32, %c0_i32_0 : i32, i32
  }
  func.func @transform_5(%arg0: i32) -> (i32, i32) {
    %c0_i32 = arith.constant 0 : i32
    %c0_i32_0 = arith.constant 0 : i32
    %c0_i32_1 = arith.constant 0 : i32
    return %c0_i32, %c0_i32_0 : i32, i32
  }
  func.func @transform_6(%arg0: i32) -> (i32, i32) {
    %c0_i32 = arith.constant 0 : i32
    %c0_i32_0 = arith.constant 0 : i32
    %c0_i32_1 = arith.constant 0 : i32
    return %c0_i32, %c0_i32_0 : i32, i32
  }
  func.func @transform_7(%arg0: i32) -> (i32, i32) {
    %c0_i32 = arith.constant 0 : i32
    %c0_i32_0 = arith.constant 0 : i32
    return %arg0, %c0_i32 : i32, i32
  }
  func.func @transform_8(%arg0: i32) -> (i32, i32) {
    %c0_i32 = arith.constant 0 : i32
    %c0_i32_0 = arith.constant 0 : i32
    return %arg0, %c0_i32 : i32, i32
  }
}

</mosaic_0001>

<llo_original>
// kernel: cond_cat_vae_forward.1
$region0: #{cond_cat_vae_forward.1}
  #allocation0 [shape = 'u32[]', space=smem, size = 0x4, offset = 0x4, fixed_abs, tag = 'smem constant byte address 0x4 - core index']
  #allocation1 [shape = 'u32[144,128]{1,0:T(1,128)}', space=vmem, size = 0x12000, scoped, tag = 'internal scratch']
  #allocation2 [shape = 'f32[1,1]{1,0:T(1,128)S(6)}', space=smem, size = 0x200, scoped, tag = 'scoped memory for cond_cat_vae_forward.1']
  %s0 = inlined_call_operand.<no memory space> [shape: f32[1,1], index: 0, kind: input, shape index: {}]
  %s1 = inlined_call_operand.vmem [shape: bf16[8,256], index: 1, kind: input, shape index: {}]
  %s2 = inlined_call_operand.vmem [shape: bf16[256,288], index: 2, kind: input, shape index: {}]
  %s3 = inlined_call_operand.vmem [shape: bf16[288,128], index: 3, kind: input, shape index: {}]
  %s4 = inlined_call_operand.vmem [shape: bf16[128,32], index: 4, kind: input, shape index: {}]
  %s5 = inlined_call_operand.vmem [shape: bf16[32,16], index: 5, kind: input, shape index: {}]
  %s6 = inlined_call_operand.vmem [shape: f32[4,288], index: 6, kind: input, shape index: {}]
  %s7 = inlined_call_operand.vmem [shape: f32[8,16], index: 7, kind: input, shape index: {}]
  %s8 = inlined_call_operand.vmem [shape: f32[8,32], index: 8, kind: output, shape index: {}]
  %s9 = sld [smem:[#allocation0]]
  $region42: #{cond_cat_vae_forward.1} parent=0
    _
  %s11 = ssub.s32 1, %s9
  %s12 = scalar_select 0, %s11, %s9
  %13 = sst [smem:[#allocation2]] %s0
  // Predicated region
  $region2: #{cond_cat_vae_forward.1} parent=0 // pred_check
    _
  $region3: #{cond_cat_vae_forward.1} parent=0 // pred_check_branch
    %15 = sbr.rel (0) target = $region5
  $region4: #{cond_cat_vae_forward.1} parent=0 // pred_region
    _
  $region5: #{cond_cat_vae_forward.1} parent=0 // pred_fallthru
    _
  // Predicated region
  $region6: #{cond_cat_vae_forward.1} parent=0 // pred_check
    _
  $region7: #{cond_cat_vae_forward.1} parent=0 // pred_check_branch
    %17 = sbr.rel (0) target = $region9
  $region8: #{cond_cat_vae_forward.1} parent=0 // pred_region
    _
  $region9: #{cond_cat_vae_forward.1} parent=0 // pred_fallthru
    _
  // Predicated region
  $region10: #{cond_cat_vae_forward.1} parent=0 // pred_check
    _
  $region11: #{cond_cat_vae_forward.1} parent=0 // pred_check_branch
    %19 = sbr.rel (0) target = $region13
  $region12: #{cond_cat_vae_forward.1} parent=0 // pred_region
    _
  $region13: #{cond_cat_vae_forward.1} parent=0 // pred_fallthru
    _
  // Predicated region
  $region14: #{cond_cat_vae_forward.1} parent=0 // pred_check
    _
  $region15: #{cond_cat_vae_forward.1} parent=0 // pred_check_branch
    %21 = sbr.rel (0) target = $region17
  $region16: #{cond_cat_vae_forward.1} parent=0 // pred_region
    _
  $region17: #{cond_cat_vae_forward.1} parent=0 // pred_fallthru
    _
  // Predicated region
  $region18: #{cond_cat_vae_forward.1} parent=0 // pred_check
    _
  $region19: #{cond_cat_vae_forward.1} parent=0 // pred_check_branch
    %23 = sbr.rel (0) target = $region21
  $region20: #{cond_cat_vae_forward.1} parent=0 // pred_region
    _
  $region21: #{cond_cat_vae_forward.1} parent=0 // pred_fallthru
    _
  // Predicated region
  $region22: #{cond_cat_vae_forward.1} parent=0 // pred_check
    _
  $region23: #{cond_cat_vae_forward.1} parent=0 // pred_check_branch
    %25 = sbr.rel (0) target = $region25
  $region24: #{cond_cat_vae_forward.1} parent=0 // pred_region
    _
  $region25: #{cond_cat_vae_forward.1} parent=0 // pred_fallthru
    _
  // Predicated region
  $region26: #{cond_cat_vae_forward.1} parent=0 // pred_check
    _
  $region27: #{cond_cat_vae_forward.1} parent=0 // pred_check_branch
    %27 = sbr.rel (0) target = $region29
  $region28: #{cond_cat_vae_forward.1} parent=0 // pred_region
    _
  $region29: #{cond_cat_vae_forward.1} parent=0 // pred_fallthru
    _
  // Predicated region
  $region30: #{cond_cat_vae_forward.1} parent=0 // pred_check
    _
  $region31: #{cond_cat_vae_forward.1} parent=0 // pred_check_branch
    %29 = sbr.rel (0) target = $region33
  $region32: #{cond_cat_vae_forward.1} parent=0 // pred_region
    _
  $region33: #{cond_cat_vae_forward.1} parent=0 // pred_fallthru
    _
  %v31 = vld [vmem:[%s1] sm:$0xff]
  %v32 = vld [vmem:[%s2] sm:$0xff]
  %v33 = vld [vmem:[%s2 + $0x8] sm:$0xf]
  %v34 = vld [vmem:[%s2 + $0xc] sm:$0xff]
  %v35 = vld [vmem:[%s2 + $0x14] sm:$0xf]
  %v36 = vld [vmem:[%s2 + $0x18] sm:$0xff]
  %v37 = vld [vmem:[%s2 + $0x20] sm:$0xf]
  %v38 = vld [vmem:[%s2 + $0x24] sm:$0xff]
  %v39 = vld [vmem:[%s2 + $0x2c] sm:$0xf]
  %v40 = vld [vmem:[%s2 + $0x30] sm:$0xff]
  %v41 = vld [vmem:[%s2 + $0x38] sm:$0xf]
  %v42 = vld [vmem:[%s2 + $0x3c] sm:$0xff]
  %v43 = vld [vmem:[%s2 + $0x44] sm:$0xf]
  %v44 = vld [vmem:[%s2 + $0x48] sm:$0xff]
  %v45 = vld [vmem:[%s2 + $0x50] sm:$0xf]
  %v46 = vld [vmem:[%s2 + $0x54] sm:$0xff]
  %v47 = vld [vmem:[%s2 + $0x5c] sm:$0xf]
  %v48 = vld [vmem:[%s2 + $0x60] sm:$0xff]
  %v49 = vld [vmem:[%s2 + $0x68] sm:$0xf]
  %v50 = vld [vmem:[%s2 + $0x6c] sm:$0xff]
  %v51 = vld [vmem:[%s2 + $0x74] sm:$0xf]
  %v52 = vld [vmem:[%s2 + $0x78] sm:$0xff]
  %v53 = vld [vmem:[%s2 + $0x80] sm:$0xf]
  %v54 = vld [vmem:[%s2 + $0x84] sm:$0xff]
  %v55 = vld [vmem:[%s2 + $0x8c] sm:$0xf]
  %v56 = vld [vmem:[%s2 + $0x90] sm:$0xff]
  %v57 = vld [vmem:[%s2 + $0x98] sm:$0xf]
  %v58 = vld [vmem:[%s2 + $0x9c] sm:$0xff]
  %v59 = vld [vmem:[%s2 + $0xa4] sm:$0xf]
  %v60 = vld [vmem:[%s2 + $0xa8] sm:$0xff]
  %v61 = vld [vmem:[%s2 + $0xb0] sm:$0xf]
  %v62 = vld [vmem:[%s2 + $0xb4] sm:$0xff]
  %v63 = vld [vmem:[%s2 + $0xbc] sm:$0xf]
  %v64 = vld [vmem:[%s2 + $0xc0] sm:$0xff]
  %v65 = vld [vmem:[%s2 + $0xc8] sm:$0xf]
  %v66 = vld [vmem:[%s2 + $0xcc] sm:$0xff]
  %v67 = vld [vmem:[%s2 + $0xd4] sm:$0xf]
  %v68 = vld [vmem:[%s2 + $0xd8] sm:$0xff]
  %v69 = vld [vmem:[%s2 + $0xe0] sm:$0xf]
  %v70 = vld [vmem:[%s2 + $0xe4] sm:$0xff]
  %v71 = vld [vmem:[%s2 + $0xec] sm:$0xf]
  %v72 = vld [vmem:[%s2 + $0xf0] sm:$0xff]
  %v73 = vld [vmem:[%s2 + $0xf8] sm:$0xf]
  %v74 = vld [vmem:[%s2 + $0xfc] sm:$0xff]
  %v75 = vld [vmem:[%s2 + $0x104] sm:$0xf]
  %v76 = vld [vmem:[%s2 + $0x108] sm:$0xff]
  %v77 = vld [vmem:[%s2 + $0x110] sm:$0xf]
  %v78 = vld [vmem:[%s2 + $0x114] sm:$0xff]
  %v79 = vld [vmem:[%s2 + $0x11c] sm:$0xf]
  %v80 = vld [vmem:[%s2 + $0x120] sm:$0xff]
  %v81 = vld [vmem:[%s2 + $0x128] sm:$0xf]
  %v82 = vld [vmem:[%s2 + $0x12c] sm:$0xff]
  %v83 = vld [vmem:[%s2 + $0x134] sm:$0xf]
  %v84 = vld [vmem:[%s2 + $0x138] sm:$0xff]
  %v85 = vld [vmem:[%s2 + $0x140] sm:$0xf]
  %v86 = vld [vmem:[%s2 + $0x144] sm:$0xff]
  %v87 = vld [vmem:[%s2 + $0x14c] sm:$0xf]
  %v88 = vld [vmem:[%s2 + $0x150] sm:$0xff]
  %v89 = vld [vmem:[%s2 + $0x158] sm:$0xf]
  %v90 = vld [vmem:[%s2 + $0x15c] sm:$0xff]
  %v91 = vld [vmem:[%s2 + $0x164] sm:$0xf]
  %v92 = vld [vmem:[%s2 + $0x168] sm:$0xff]
  %v93 = vld [vmem:[%s2 + $0x170] sm:$0xf]
  %v94 = vld [vmem:[%s2 + $0x174] sm:$0xff]
  %v95 = vld [vmem:[%s2 + $0x17c] sm:$0xf]
  %v96 = vld [vmem:[%s6] ss:$4 sm:$0x7]
  %v98 = vlaneseq
  %v99 = vshrl.u32 %v98, 7
  %v100 = vsub.s32 0, %v99
  %v101 = vrot.slane %v96, %v100
  %v102 = vlaneseq
  %v103 = vshrl.u32 %v102, 7
  %v104 = vsub.s32 1, %v103
  %v105 = vrot.slane %v96, %v104
  %v106 = vlaneseq
  %v107 = vshrl.u32 %v106, 7
  %v108 = vsub.s32 2, %v107
  %v109 = vrot.slane %v96, %v108
  %v114 = vunpack.c.l.b16 %v31
  %v115 = vunpack.c.h.b16 %v31
  %v116 = vpack.c.b16 %v114, %v114
  %v117 = vpack.c.b16 %v115, %v115
  %v184 = vunpack.c.l.b16 %v32
  %v185 = vunpack.c.h.b16 %v32
  %v186 = vunpack.c.l.b16 %v33
  %v187 = vunpack.c.l.b16 %v34
  %v188 = vunpack.c.h.b16 %v34
  %v189 = vunpack.c.l.b16 %v35
  %v190 = vunpack.c.l.b16 %v36
  %v191 = vunpack.c.h.b16 %v36
  %v192 = vunpack.c.l.b16 %v37
  %v193 = vunpack.c.l.b16 %v38
  %v194 = vunpack.c.h.b16 %v38
  %v195 = vunpack.c.l.b16 %v39
  %v196 = vunpack.c.l.b16 %v40
  %v197 = vunpack.c.h.b16 %v40
  %v198 = vunpack.c.l.b16 %v41
  %v199 = vunpack.c.l.b16 %v42
  %v200 = vunpack.c.h.b16 %v42
  %v201 = vunpack.c.l.b16 %v43
  %v202 = vunpack.c.l.b16 %v44
  %v203 = vunpack.c.h.b16 %v44
  %v204 = vunpack.c.l.b16 %v45
  %v205 = vunpack.c.l.b16 %v46
  %v206 = vunpack.c.h.b16 %v46
  %v207 = vunpack.c.l.b16 %v47
  %v208 = vunpack.c.l.b16 %v48
  %v209 = vunpack.c.h.b16 %v48
  %v210 = vunpack.c.l.b16 %v49
  %v211 = vunpack.c.l.b16 %v50
  %v212 = vunpack.c.h.b16 %v50
  %v213 = vunpack.c.l.b16 %v51
  %v214 = vunpack.c.l.b16 %v52
  %v215 = vunpack.c.h.b16 %v52
  %v216 = vunpack.c.l.b16 %v53
  %v217 = vunpack.c.l.b16 %v54
  %v218 = vunpack.c.h.b16 %v54
  %v219 = vunpack.c.l.b16 %v55
  %v220 = vunpack.c.l.b16 %v56
  %v221 = vunpack.c.h.b16 %v56
  %v222 = vunpack.c.l.b16 %v57
  %v223 = vunpack.c.l.b16 %v58
  %v224 = vunpack.c.h.b16 %v58
  %v225 = vunpack.c.l.b16 %v59
  %v226 = vunpack.c.l.b16 %v60
  %v227 = vunpack.c.h.b16 %v60
  %v228 = vunpack.c.l.b16 %v61
  %v229 = vunpack.c.l.b16 %v62
  %v230 = vunpack.c.h.b16 %v62
  %v231 = vunpack.c.l.b16 %v63
  %v232 = vunpack.c.l.b16 %v64
  %v233 = vunpack.c.h.b16 %v64
  %v234 = vunpack.c.l.b16 %v65
  %v235 = vunpack.c.l.b16 %v66
  %v236 = vunpack.c.h.b16 %v66
  %v237 = vunpack.c.l.b16 %v67
  %v238 = vunpack.c.l.b16 %v68
  %v239 = vunpack.c.h.b16 %v68
  %v240 = vunpack.c.l.b16 %v69
  %v241 = vunpack.c.l.b16 %v70
  %v242 = vunpack.c.h.b16 %v70
  %v243 = vunpack.c.l.b16 %v71
  %v244 = vunpack.c.l.b16 %v72
  %v245 = vunpack.c.h.b16 %v72
  %v246 = vunpack.c.l.b16 %v73
  %v247 = vunpack.c.l.b16 %v74
  %v248 = vunpack.c.h.b16 %v74
  %v249 = vunpack.c.l.b16 %v75
  %v250 = vunpack.c.l.b16 %v76
  %v251 = vunpack.c.h.b16 %v76
  %v252 = vunpack.c.l.b16 %v77
  %v253 = vunpack.c.l.b16 %v78
  %v254 = vunpack.c.h.b16 %v78
  %v255 = vunpack.c.l.b16 %v79
  %v256 = vunpack.c.l.b16 %v80
  %v257 = vunpack.c.h.b16 %v80
  %v258 = vunpack.c.l.b16 %v81
  %v259 = vunpack.c.l.b16 %v82
  %v260 = vunpack.c.h.b16 %v82
  %v261 = vunpack.c.l.b16 %v83
  %v262 = vunpack.c.l.b16 %v84
  %v263 = vunpack.c.h.b16 %v84
  %v264 = vunpack.c.l.b16 %v85
  %v265 = vunpack.c.l.b16 %v86
  %v266 = vunpack.c.h.b16 %v86
  %v267 = vunpack.c.l.b16 %v87
  %v268 = vunpack.c.l.b16 %v88
  %v269 = vunpack.c.h.b16 %v88
  %v270 = vunpack.c.l.b16 %v89
  %v271 = vunpack.c.l.b16 %v90
  %v272 = vunpack.c.h.b16 %v90
  %v273 = vunpack.c.l.b16 %v91
  %v274 = vunpack.c.l.b16 %v92
  %v275 = vunpack.c.h.b16 %v92
  %v276 = vunpack.c.l.b16 %v93
  %v277 = vunpack.c.l.b16 %v94
  %v278 = vunpack.c.h.b16 %v94
  %v279 = vunpack.c.l.b16 %v95
  %v280 = vpack.c.b16 %v187, %v184
  %v281 = vpack.c.b16 %v188, %v185
  %v282 = vpack.c.b16 %v189, %v186
  %v283 = vpack.c.b16 %v193, %v190
  %v284 = vpack.c.b16 %v194, %v191
  %v285 = vpack.c.b16 %v195, %v192
  %v286 = vpack.c.b16 %v199, %v196
  %v287 = vpack.c.b16 %v200, %v197
  %v288 = vpack.c.b16 %v201, %v198
  %v289 = vpack.c.b16 %v205, %v202
  %v290 = vpack.c.b16 %v206, %v203
  %v291 = vpack.c.b16 %v207, %v204
  %v292 = vpack.c.b16 %v211, %v208
  %v293 = vpack.c.b16 %v212, %v209
  %v294 = vpack.c.b16 %v213, %v210
  %v295 = vpack.c.b16 %v217, %v214
  %v296 = vpack.c.b16 %v218, %v215
  %v297 = vpack.c.b16 %v219, %v216
  %v298 = vpack.c.b16 %v223, %v220
  %v299 = vpack.c.b16 %v224, %v221
  %v300 = vpack.c.b16 %v225, %v222
  %v301 = vpack.c.b16 %v229, %v226
  %v302 = vpack.c.b16 %v230, %v227
  %v303 = vpack.c.b16 %v231, %v228
  %v304 = vpack.c.b16 %v235, %v232
  %v305 = vpack.c.b16 %v236, %v233
  %v306 = vpack.c.b16 %v237, %v234
  %v307 = vpack.c.b16 %v241, %v238
  %v308 = vpack.c.b16 %v242, %v239
  %v309 = vpack.c.b16 %v243, %v240
  %v310 = vpack.c.b16 %v247, %v244
  %v311 = vpack.c.b16 %v248, %v245
  %v312 = vpack.c.b16 %v249, %v246
  %v313 = vpack.c.b16 %v253, %v250
  %v314 = vpack.c.b16 %v254, %v251
  %v315 = vpack.c.b16 %v255, %v252
  %v316 = vpack.c.b16 %v259, %v256
  %v317 = vpack.c.b16 %v260, %v257
  %v318 = vpack.c.b16 %v261, %v258
  %v319 = vpack.c.b16 %v265, %v262
  %v320 = vpack.c.b16 %v266, %v263
  %v321 = vpack.c.b16 %v267, %v264
  %v322 = vpack.c.b16 %v271, %v268
  %v323 = vpack.c.b16 %v272, %v269
  %v324 = vpack.c.b16 %v273, %v270
  %v325 = vpack.c.b16 %v277, %v274
  %v326 = vpack.c.b16 %v278, %v275
  %v327 = vpack.c.b16 %v279, %v276
  %376 = vmatprep.subr.bf16.mxu0 %v302
  %377 = vmatpush1.bf16.msra.mxu0 %v301
  %378 = vmatprep.subr.bf16.mxu0 %v299
  %379 = vmatpush1.bf16.msra.mxu0 %v298
  %380 = vmatprep.subr.bf16.mxu0 %v296
  %381 = vmatpush1.bf16.msra.mxu0 %v295
  %382 = vmatprep.subr.bf16.mxu0 %v293
  %383 = vmatpush1.bf16.msra.mxu0 %v292
  %384 = vmatprep.subr.bf16.mxu0 %v290
  %385 = vmatpush1.bf16.msra.mxu0 %v289
  %386 = vmatprep.subr.bf16.mxu0 %v287
  %387 = vmatpush1.bf16.msra.mxu0 %v286
  %388 = vmatprep.subr.bf16.mxu0 %v284
  %389 = vmatpush1.bf16.msra.mxu0 %v283
  %390 = vmatprep.subr.bf16.mxu0 %v281
  %391 = vmatpush1.bf16.msra.mxu0 %v280
  %392 = vmatprep.subr.bf16.mxu0 %v326
  %393 = vmatpush2.bf16.msra.mxu0 %v325
  %394 = vmatprep.subr.bf16.mxu0 %v323
  %395 = vmatpush2.bf16.msra.mxu0 %v322
  %396 = vmatprep.subr.bf16.mxu0 %v320
  %397 = vmatpush2.bf16.msra.mxu0 %v319
  %398 = vmatprep.subr.bf16.mxu0 %v317
  %399 = vmatpush2.bf16.msra.mxu0 %v316
  %400 = vmatprep.subr.bf16.mxu0 %v314
  %401 = vmatpush2.bf16.msra.mxu0 %v313
  %402 = vmatprep.subr.bf16.mxu0 %v311
  %403 = vmatpush2.bf16.msra.mxu0 %v310
  %404 = vmatprep.subr.bf16.mxu0 %v308
  %405 = vmatpush2.bf16.msra.mxu0 %v307
  %406 = vmatprep.subr.bf16.mxu0 %v305
  %407 = vmatpush2.bf16.msra.mxu0 %v304
  %408 = vmatprep.mubr.bf16.mxu0 %v117
  %409 = vmatmul.mubr.bf16.gmra.mxu0 %v116
  %v410 = vpop.f32.mrf.mxu0
  %v411 = vadd.f32 %v101, %v410
  %v412 = vpop.f32.mrf.mxu0
  %v413 = vadd.f32 %v105, %v412
  %v414 = vpop.f32.mrf.mxu0
  %v415 = vpop.f32.mrf.mxu0
  %416 = vdwg.mxu0
  %417 = vmatprep.subr.bf16.mxu0 0
  %418 = vmatpush1.bf16.msra.mxu0 %v303
  %419 = vmatprep.subr.bf16.mxu0 0
  %420 = vmatpush1.bf16.msra.mxu0 %v300
  %421 = vmatprep.subr.bf16.mxu0 0
  %422 = vmatpush1.bf16.msra.mxu0 %v297
  %423 = vmatprep.subr.bf16.mxu0 0
  %424 = vmatpush1.bf16.msra.mxu0 %v294
  %425 = vmatprep.subr.bf16.mxu0 0
  %426 = vmatpush1.bf16.msra.mxu0 %v291
  %427 = vmatprep.subr.bf16.mxu0 0
  %428 = vmatpush1.bf16.msra.mxu0 %v288
  %429 = vmatprep.subr.bf16.mxu0 0
  %430 = vmatpush1.bf16.msra.mxu0 %v285
  %431 = vmatprep.subr.bf16.mxu0 0
  %432 = vmatpush1.bf16.msra.mxu0 %v282
  %433 = vmatprep.subr.bf16.mxu0 0
  %434 = vmatpush2.bf16.msra.mxu0 %v327
  %435 = vmatprep.subr.bf16.mxu0 0
  %436 = vmatpush2.bf16.msra.mxu0 %v324
  %437 = vmatprep.subr.bf16.mxu0 0
  %438 = vmatpush2.bf16.msra.mxu0 %v321
  %439 = vmatprep.subr.bf16.mxu0 0
  %440 = vmatpush2.bf16.msra.mxu0 %v318
  %441 = vmatprep.subr.bf16.mxu0 0
  %442 = vmatpush2.bf16.msra.mxu0 %v315
  %443 = vmatprep.subr.bf16.mxu0 0
  %444 = vmatpush2.bf16.msra.mxu0 %v312
  %445 = vmatprep.subr.bf16.mxu0 0
  %446 = vmatpush2.bf16.msra.mxu0 %v309
  %447 = vmatprep.subr.bf16.mxu0 0
  %448 = vmatpush2.bf16.msra.mxu0 %v306
  %449 = vmatprep.mubr.bf16.mxu0 %v117
  %450 = vmatmul.mubr.bf16.gmra.mxu0 %v116
  %v451 = vpop.f32.mrf.mxu0
  %v452 = vadd.f32 %v109, %v451
  %v453 = vpop.f32.mrf.mxu0
  %v454 = vpop.f32.mrf.mxu0
  %v455 = vpop.f32.mrf.mxu0
  %456 = vdwg.mxu0
  %v457 = vmax.f32 %v411, 0.0
  %v458 = vmax.f32 %v413, 0.0
  %v459 = vmax.f32 %v452, 0.0
  %v460 = vpack.c.bf16 %v457, %v457
  %v461 = vpack.c.bf16 %v458, %v458
  %v462 = vpack.c.bf16 %v459, %v459
  %v463 = vld [vmem:[%s3] sm:$0xf]
  %v464 = vld [vmem:[%s3 + $0x4] sm:$0xf]
  %v465 = vld [vmem:[%s3 + $0x8] sm:$0xf]
  %v466 = vld [vmem:[%s3 + $0xc] sm:$0xf]
  %v467 = vld [vmem:[%s3 + $0x10] sm:$0xf]
  %v468 = vld [vmem:[%s3 + $0x14] sm:$0xf]
  %v469 = vld [vmem:[%s3 + $0x18] sm:$0xf]
  %v470 = vld [vmem:[%s3 + $0x1c] sm:$0xf]
  %v471 = vld [vmem:[%s3 + $0x20] sm:$0xf]
  %v472 = vld [vmem:[%s3 + $0x24] sm:$0xf]
  %v473 = vld [vmem:[%s3 + $0x28] sm:$0xf]
  %v474 = vld [vmem:[%s3 + $0x2c] sm:$0xf]
  %v475 = vld [vmem:[%s3 + $0x30] sm:$0xf]
  %v476 = vld [vmem:[%s3 + $0x34] sm:$0xf]
  %v477 = vld [vmem:[%s3 + $0x38] sm:$0xf]
  %v478 = vld [vmem:[%s3 + $0x3c] sm:$0xf]
  %v479 = vld [vmem:[%s3 + $0x40] sm:$0xf]
  %v480 = vld [vmem:[%s3 + $0x44] sm:$0xf]
  %v481 = vld [vmem:[%s3 + $0x48] sm:$0xf]
  %v482 = vld [vmem:[%s3 + $0x4c] sm:$0xf]
  %v483 = vld [vmem:[%s3 + $0x50] sm:$0xf]
  %v484 = vld [vmem:[%s3 + $0x54] sm:$0xf]
  %v485 = vld [vmem:[%s3 + $0x58] sm:$0xf]
  %v486 = vld [vmem:[%s3 + $0x5c] sm:$0xf]
  %v487 = vld [vmem:[%s3 + $0x60] sm:$0xf]
  %v488 = vld [vmem:[%s3 + $0x64] sm:$0xf]
  %v489 = vld [vmem:[%s3 + $0x68] sm:$0xf]
  %v490 = vld [vmem:[%s3 + $0x6c] sm:$0xf]
  %v491 = vld [vmem:[%s3 + $0x70] sm:$0xf]
  %v492 = vld [vmem:[%s3 + $0x74] sm:$0xf]
  %v493 = vld [vmem:[%s3 + $0x78] sm:$0xf]
  %v494 = vld [vmem:[%s3 + $0x7c] sm:$0xf]
  %v495 = vld [vmem:[%s3 + $0x80] sm:$0xf]
  %v496 = vld [vmem:[%s3 + $0x84] sm:$0xf]
  %v497 = vld [vmem:[%s3 + $0x88] sm:$0xf]
  %v498 = vld [vmem:[%s3 + $0x8c] sm:$0xf]
  %v499 = vld [vmem:[%s6 + $0x1] sm:$0x1]
  %v500 = vlaneseq
  %v501 = vshrl.u32 %v500, 7
  %v502 = vsub.s32 0, %v501
  %v503 = vrot.slane %v499, %v502
  %v540 = vunpack.c.l.b16 %v463
  %v541 = vunpack.c.l.b16 %v464
  %v542 = vunpack.c.l.b16 %v465
  %v543 = vunpack.c.l.b16 %v466
  %v544 = vunpack.c.l.b16 %v467
  %v545 = vunpack.c.l.b16 %v468
  %v546 = vunpack.c.l.b16 %v469
  %v547 = vunpack.c.l.b16 %v470
  %v548 = vunpack.c.l.b16 %v471
  %v549 = vunpack.c.l.b16 %v472
  %v550 = vunpack.c.l.b16 %v473
  %v551 = vunpack.c.l.b16 %v474
  %v552 = vunpack.c.l.b16 %v475
  %v553 = vunpack.c.l.b16 %v476
  %v554 = vunpack.c.l.b16 %v477
  %v555 = vunpack.c.l.b16 %v478
  %v556 = vunpack.c.l.b16 %v479
  %v557 = vunpack.c.l.b16 %v480
  %v558 = vunpack.c.l.b16 %v481
  %v559 = vunpack.c.l.b16 %v482
  %v560 = vunpack.c.l.b16 %v483
  %v561 = vunpack.c.l.b16 %v484
  %v562 = vunpack.c.l.b16 %v485
  %v563 = vunpack.c.l.b16 %v486
  %v564 = vunpack.c.l.b16 %v487
  %v565 = vunpack.c.l.b16 %v488
  %v566 = vunpack.c.l.b16 %v489
  %v567 = vunpack.c.l.b16 %v490
  %v568 = vunpack.c.l.b16 %v491
  %v569 = vunpack.c.l.b16 %v492
  %v570 = vunpack.c.l.b16 %v493
  %v571 = vunpack.c.l.b16 %v494
  %v572 = vunpack.c.l.b16 %v495
  %v573 = vunpack.c.l.b16 %v496
  %v574 = vunpack.c.l.b16 %v497
  %v575 = vunpack.c.l.b16 %v498
  %v576 = vpack.c.b16 %v541, %v540
  %v577 = vpack.c.b16 %v543, %v542
  %v578 = vpack.c.b16 %v545, %v544
  %v579 = vpack.c.b16 %v547, %v546
  %v580 = vpack.c.b16 %v549, %v548
  %v581 = vpack.c.b16 %v551, %v550
  %v582 = vpack.c.b16 %v553, %v552
  %v583 = vpack.c.b16 %v555, %v554
  %v584 = vpack.c.b16 %v557, %v556
  %v585 = vpack.c.b16 %v559, %v558
  %v586 = vpack.c.b16 %v561, %v560
  %v587 = vpack.c.b16 %v563, %v562
  %v588 = vpack.c.b16 %v565, %v564
  %v589 = vpack.c.b16 %v567, %v566
  %v590 = vpack.c.b16 %v569, %v568
  %v591 = vpack.c.b16 %v571, %v570
  %v592 = vpack.c.b16 %v573, %v572
  %v593 = vpack.c.b16 %v575, %v574
  %vm612 = vcmask 261120
  %v614 = vsel %vm612, %v462, 0
  %616 = vmatprep.subr.bf16.mxu0 0
  %617 = vmatpush1.bf16.msra.mxu0 %v583
  %618 = vmatprep.subr.bf16.mxu0 0
  %619 = vmatpush1.bf16.msra.mxu0 %v582
  %620 = vmatprep.subr.bf16.mxu0 0
  %621 = vmatpush1.bf16.msra.mxu0 %v581
  %622 = vmatprep.subr.bf16.mxu0 0
  %623 = vmatpush1.bf16.msra.mxu0 %v580
  %624 = vmatprep.subr.bf16.mxu0 0
  %625 = vmatpush1.bf16.msra.mxu0 %v579
  %626 = vmatprep.subr.bf16.mxu0 0
  %627 = vmatpush1.bf16.msra.mxu0 %v578
  %628 = vmatprep.subr.bf16.mxu0 0
  %629 = vmatpush1.bf16.msra.mxu0 %v577
  %630 = vmatprep.subr.bf16.mxu0 0
  %631 = vmatpush1.bf16.msra.mxu0 %v576
  %632 = vmatprep.subr.bf16.mxu0 0
  %633 = vmatpush2.bf16.msra.mxu0 %v591
  %634 = vmatprep.subr.bf16.mxu0 0
  %635 = vmatpush2.bf16.msra.mxu0 %v590
  %636 = vmatprep.subr.bf16.mxu0 0
  %637 = vmatpush2.bf16.msra.mxu0 %v589
  %638 = vmatprep.subr.bf16.mxu0 0
  %639 = vmatpush2.bf16.msra.mxu0 %v588
  %640 = vmatprep.subr.bf16.mxu0 0
  %641 = vmatpush2.bf16.msra.mxu0 %v587
  %642 = vmatprep.subr.bf16.mxu0 0
  %643 = vmatpush2.bf16.msra.mxu0 %v586
  %644 = vmatprep.subr.bf16.mxu0 0
  %645 = vmatpush2.bf16.msra.mxu0 %v585
  %646 = vmatprep.subr.bf16.mxu0 0
  %647 = vmatpush2.bf16.msra.mxu0 %v584
  %648 = vmatprep.mubr.bf16.mxu0 %v461
  %649 = vmatmul.mubr.bf16.gmra.mxu0 %v460
  %v650 = vpop.f32.mrf.mxu0
  %v651 = vadd.f32 %v503, %v650
  %v652 = vpop.f32.mrf.mxu0
  %v653 = vpop.f32.mrf.mxu0
  %v654 = vpop.f32.mrf.mxu0
  %655 = vdwg.mxu0
  %656 = vmatprep.subr.bf16.mxu0 0
  %657 = vmatpush1.bf16.msra.mxu0 0
  %658 = vmatprep.subr.bf16.mxu0 0
  %659 = vmatpush1.bf16.msra.mxu0 0
  %660 = vmatprep.subr.bf16.mxu0 0
  %661 = vmatpush1.bf16.msra.mxu0 0
  %662 = vmatprep.subr.bf16.mxu0 0
  %663 = vmatpush1.bf16.msra.mxu0 0
  %664 = vmatprep.subr.bf16.mxu0 0
  %665 = vmatpush1.bf16.msra.mxu0 0
  %666 = vmatprep.subr.bf16.mxu0 0
  %667 = vmatpush1.bf16.msra.mxu0 0
  %668 = vmatprep.subr.bf16.mxu0 0
  %669 = vmatpush1.bf16.msra.mxu0 %v593
  %670 = vmatprep.subr.bf16.mxu0 0
  %671 = vmatpush1.bf16.msra.mxu0 %v592
  %672 = vmatprep.subr.bf16.mxu0 0
  %673 = vmatpush2.bf16.msra.mxu0 0
  %674 = vmatprep.subr.bf16.mxu0 0
  %675 = vmatpush2.bf16.msra.mxu0 0
  %676 = vmatprep.subr.bf16.mxu0 0
  %677 = vmatpush2.bf16.msra.mxu0 0
  %678 = vmatprep.subr.bf16.mxu0 0
  %679 = vmatpush2.bf16.msra.mxu0 0
  %680 = vmatprep.subr.bf16.mxu0 0
  %681 = vmatpush2.bf16.msra.mxu0 0
  %682 = vmatprep.subr.bf16.mxu0 0
  %683 = vmatpush2.bf16.msra.mxu0 0
  %684 = vmatprep.subr.bf16.mxu0 0
  %685 = vmatpush2.bf16.msra.mxu0 0
  %686 = vmatprep.subr.bf16.mxu0 0
  %687 = vmatpush2.bf16.msra.mxu0 0
  %688 = vmatprep.mubr.bf16.mxu0 0
  %689 = vmatmul.mubr.bf16.gmra.mxu0 %v614
  %v690 = vpop.f32.mrf.mxu0
  %v691 = vadd.f32 %v651, %v690
  %v692 = vpop.f32.mrf.mxu0
  %v693 = vpop.f32.mrf.mxu0
  %v694 = vpop.f32.mrf.mxu0
  %695 = vdwg.mxu0
  %v696 = vmax.f32 %v691, 0.0
  %v697 = vpack.c.bf16 %v696, %v696
  %v698 = vld [vmem:[%s4] sm:$0xf]
  %v699 = vld [vmem:[%s4 + $0x4] sm:$0xf]
  %v700 = vld [vmem:[%s4 + $0x8] sm:$0xf]
  %v701 = vld [vmem:[%s4 + $0xc] sm:$0xf]
  %v702 = vld [vmem:[%s4 + $0x10] sm:$0xf]
  %v703 = vld [vmem:[%s4 + $0x14] sm:$0xf]
  %v704 = vld [vmem:[%s4 + $0x18] sm:$0xf]
  %v705 = vld [vmem:[%s4 + $0x1c] sm:$0xf]
  %v706 = vld [vmem:[%s4 + $0x20] sm:$0xf]
  %v707 = vld [vmem:[%s4 + $0x24] sm:$0xf]
  %v708 = vld [vmem:[%s4 + $0x28] sm:$0xf]
  %v709 = vld [vmem:[%s4 + $0x2c] sm:$0xf]
  %v710 = vld [vmem:[%s4 + $0x30] sm:$0xf]
  %v711 = vld [vmem:[%s4 + $0x34] sm:$0xf]
  %v712 = vld [vmem:[%s4 + $0x38] sm:$0xf]
  %v713 = vld [vmem:[%s4 + $0x3c] sm:$0xf]
  %v714 = vld [vmem:[%s6 + $0x2] sm:$0x1]
  %v715 = vlaneseq
  %v716 = vshrl.u32 %v715, 7
  %v717 = vsub.s32 0, %v716
  %v718 = vrot.slane %v714, %v717
  %v735 = vunpack.c.l.b16 %v698
  %v736 = vunpack.c.l.b16 %v699
  %v737 = vunpack.c.l.b16 %v700
  %v738 = vunpack.c.l.b16 %v701
  %v739 = vunpack.c.l.b16 %v702
  %v740 = vunpack.c.l.b16 %v703
  %v741 = vunpack.c.l.b16 %v704
  %v742 = vunpack.c.l.b16 %v705
  %v743 = vunpack.c.l.b16 %v706
  %v744 = vunpack.c.l.b16 %v707
  %v745 = vunpack.c.l.b16 %v708
  %v746 = vunpack.c.l.b16 %v709
  %v747 = vunpack.c.l.b16 %v710
  %v748 = vunpack.c.l.b16 %v711
  %v749 = vunpack.c.l.b16 %v712
  %v750 = vunpack.c.l.b16 %v713
  %v751 = vpack.c.b16 %v736, %v735
  %v752 = vpack.c.b16 %v738, %v737
  %v753 = vpack.c.b16 %v740, %v739
  %v754 = vpack.c.b16 %v742, %v741
  %v755 = vpack.c.b16 %v744, %v743
  %v756 = vpack.c.b16 %v746, %v745
  %v757 = vpack.c.b16 %v748, %v747
  %v758 = vpack.c.b16 %v750, %v749
  %767 = vmatprep.subr.bf16.mxu0 0
  %768 = vmatpush1.bf16.msra.mxu0 %v758
  %769 = vmatprep.subr.bf16.mxu0 0
  %770 = vmatpush1.bf16.msra.mxu0 %v757
  %771 = vmatprep.subr.bf16.mxu0 0
  %772 = vmatpush1.bf16.msra.mxu0 %v756
  %773 = vmatprep.subr.bf16.mxu0 0
  %774 = vmatpush1.bf16.msra.mxu0 %v755
  %775 = vmatprep.subr.bf16.mxu0 0
  %776 = vmatpush1.bf16.msra.mxu0 %v754
  %777 = vmatprep.subr.bf16.mxu0 0
  %778 = vmatpush1.bf16.msra.mxu0 %v753
  %779 = vmatprep.subr.bf16.mxu0 0
  %780 = vmatpush1.bf16.msra.mxu0 %v752
  %781 = vmatprep.subr.bf16.mxu0 0
  %782 = vmatpush1.bf16.msra.mxu0 %v751
  %783 = vmatprep.subr.bf16.mxu0 0
  %784 = vmatpush2.bf16.msra.mxu0 0
  %785 = vmatprep.subr.bf16.mxu0 0
  %786 = vmatpush2.bf16.msra.mxu0 0
  %787 = vmatprep.subr.bf16.mxu0 0
  %788 = vmatpush2.bf16.msra.mxu0 0
  %789 = vmatprep.subr.bf16.mxu0 0
  %790 = vmatpush2.bf16.msra.mxu0 0
  %791 = vmatprep.subr.bf16.mxu0 0
  %792 = vmatpush2.bf16.msra.mxu0 0
  %793 = vmatprep.subr.bf16.mxu0 0
  %794 = vmatpush2.bf16.msra.mxu0 0
  %795 = vmatprep.subr.bf16.mxu0 0
  %796 = vmatpush2.bf16.msra.mxu0 0
  %797 = vmatprep.subr.bf16.mxu0 0
  %798 = vmatpush2.bf16.msra.mxu0 0
  %799 = vmatprep.mubr.bf16.mxu0 0
  %800 = vmatmul.mubr.bf16.gmra.mxu0 %v697
  %v801 = vpop.f32.mrf.mxu0
  %v802 = vadd.f32 %v718, %v801
  %v803 = vpop.f32.mrf.mxu0
  %v804 = vpop.f32.mrf.mxu0
  %v805 = vpop.f32.mrf.mxu0
  %806 = vdwg.mxu0
  %v807 = vmax.f32 %v802, 0.0
  %v808 = vpack.c.bf16 %v807, %v807
  %v809 = vld [vmem:[%s5] sm:$0xf]
  %v810 = vld [vmem:[%s5 + $0x4] sm:$0xf]
  %v811 = vld [vmem:[%s5 + $0x8] sm:$0xf]
  %v812 = vld [vmem:[%s5 + $0xc] sm:$0xf]
  %v813 = vld [vmem:[%s6 + $0x3] sm:$0x1]
  %v814 = vlaneseq
  %v815 = vshrl.u32 %v814, 7
  %v816 = vsub.s32 0, %v815
  %v817 = vrot.slane %v813, %v816
  %v822 = vunpack.c.l.b16 %v809
  %v823 = vunpack.c.l.b16 %v810
  %v824 = vunpack.c.l.b16 %v811
  %v825 = vunpack.c.l.b16 %v812
  %v826 = vpack.c.b16 %v823, %v822
  %v827 = vpack.c.b16 %v825, %v824
  %v831 = vsel %vm612, %v808, 0
  %833 = vmatprep.subr.bf16.mxu0 0
  %834 = vmatpush1.bf16.msra.mxu0 0
  %835 = vmatprep.subr.bf16.mxu0 0
  %836 = vmatpush1.bf16.msra.mxu0 0
  %837 = vmatprep.subr.bf16.mxu0 0
  %838 = vmatpush1.bf16.msra.mxu0 0
  %839 = vmatprep.subr.bf16.mxu0 0
  %840 = vmatpush1.bf16.msra.mxu0 0
  %841 = vmatprep.subr.bf16.mxu0 0
  %842 = vmatpush1.bf16.msra.mxu0 0
  %843 = vmatprep.subr.bf16.mxu0 0
  %844 = vmatpush1.bf16.msra.mxu0 0
  %845 = vmatprep.subr.bf16.mxu0 0
  %846 = vmatpush1.bf16.msra.mxu0 %v827
  %847 = vmatprep.subr.bf16.mxu0 0
  %848 = vmatpush1.bf16.msra.mxu0 %v826
  %849 = vmatprep.subr.bf16.mxu0 0
  %850 = vmatpush2.bf16.msra.mxu0 0
  %851 = vmatprep.subr.bf16.mxu0 0
  %852 = vmatpush2.bf16.msra.mxu0 0
  %853 = vmatprep.subr.bf16.mxu0 0
  %854 = vmatpush2.bf16.msra.mxu0 0
  %855 = vmatprep.subr.bf16.mxu0 0
  %856 = vmatpush2.bf16.msra.mxu0 0
  %857 = vmatprep.subr.bf16.mxu0 0
  %858 = vmatpush2.bf16.msra.mxu0 0
  %859 = vmatprep.subr.bf16.mxu0 0
  %860 = vmatpush2.bf16.msra.mxu0 0
  %861 = vmatprep.subr.bf16.mxu0 0
  %862 = vmatpush2.bf16.msra.mxu0 0
  %863 = vmatprep.subr.bf16.mxu0 0
  %864 = vmatpush2.bf16.msra.mxu0 0
  %865 = vmatprep.mubr.bf16.mxu0 0
  %866 = vmatmul.mubr.bf16.gmra.mxu0 %v831
  %v867 = vpop.f32.mrf.mxu0
  %v868 = vadd.f32 %v817, %v867
  %v869 = vpop.f32.mrf.mxu0
  %v870 = vpop.f32.mrf.mxu0
  %v871 = vpop.f32.mrf.mxu0
  %872 = vdwg.mxu0
  %v873 = vld [vmem:[%s7] sm:$0xff]
  %v874 = vadd.f32 %v868, %v873
  %s875 = sld [smem:[#allocation2]]
  %v876 = vstv %s875
  %v877 = vrcp.pop %v876
  %v878 = vmul.f32 %v874, %v877
  %vm879 = vcmask 130048
  %v880 = vsel %vm879, %v878, -inf
  %881 = vmax.xlane.f32.xlu0 %v880
  %v882 = vpop.xlane.xlu0 %881
  %v883 = vsub.f32 %v878, %v882
  %v884 = vmul.f32 %v883, 1.442695
  %v885 = vpow.pop %v884
  %v886 = vsel %vm879, %v885, 0.0
  %887 = vadd.xlane.f32.xlu0 %v886
  %v888 = vpop.xlane.xlu0 %887
  %v889 = vrcp.pop %v888
  %v890 = vmul.f32 %v885, %v889
  %892 = vrot.lane.b32.xlu0 %v868, 16
  %v893 = vpop.permute.xlu0 %892
  %v895 = vsel %vm879, %v890, %v893
  %896 = vst.msk [vmem:[%s8] sm:$0xff] %vm612, %v895
  // Predicated region
  $region34: #{cond_cat_vae_forward.1} parent=0 // pred_check
    _
  $region35: #{cond_cat_vae_forward.1} parent=0 // pred_check_branch
    %898 = sbr.rel (0) target = $region37
  $region36: #{cond_cat_vae_forward.1} parent=0 // pred_region
    _
  $region37: #{cond_cat_vae_forward.1} parent=0 // pred_fallthru
    _
  // Predicated region
  $region38: #{cond_cat_vae_forward.1} parent=0 // pred_check
    _
  $region39: #{cond_cat_vae_forward.1} parent=0 // pred_check_branch
    %900 = sbr.rel (0) target = $region41
  $region40: #{cond_cat_vae_forward.1} parent=0 // pred_region
    _
  $region41: #{cond_cat_vae_forward.1} parent=0 // pred_fallthru
    _

</llo_original>
